<compile_context>
chip_gen: v7x
topology: tpu7x:2x2x1
jax: 0.10.0
libtpu: 0.0.40
codegen_flags: <defaults>
</compile_context>

<pallas_src>
import functools

import jax
import jax.numpy as jnp
from jax.experimental import pallas as pl
from jax.experimental.pallas import tpu as pltpu

_LANES = 128


def _round_up(x, m):
    return (x + m - 1) // m * m


def poly_kernel(t_ref, w_ref, o_ref, *, degree, dimension):
    # t_ref: (bm, 128) VMEM, w_ref: (degree, dimension) SMEM,
    # o_ref: (dimension, bm, 128) VMEM.
    t = t_ref[...]
    for d in range(dimension):
        # Horner: p(t) = t*(w[0,d] + t*(w[1,d] + ... + t*w[degree-1,d]))
        acc = t * w_ref[degree - 1, d]
        for k in range(degree - 2, -1, -1):
            acc = (acc + w_ref[k, d]) * t
        o_ref[d] = acc


def polynomial_forward(t, w, *, block_rows=1024):
    """t: (B, L) float32 time values, w: (degree, dimension) float32 (= coef.weight.T).

    Returns (B, L, dimension) float32, matching Polynomial.forward.
    """
    B, L = t.shape
    degree, dimension = w.shape
    N = B * L

    # Lane-dense layout: N elements -> (M, 128) rows, tail padded.
    M = pl.cdiv(N, _LANES)
    t_flat = t.reshape(-1).astype(jnp.float32)
    pad = M * _LANES - N
    if pad:
        t_flat = jnp.pad(t_flat, (0, pad))
    t2d = t_flat.reshape(M, _LANES)

    # Big tiles to amortize per-step overhead; keep >= 2 grid steps when there
    # is enough work (v7x megacore); full-extent block for tiny inputs.
    if M <= 8:
        bm = M
    else:
        bm = min(block_rows, _round_up(pl.cdiv(M, 2), 8))
    grid = (pl.cdiv(M, bm),)

    out = pl.pallas_call(
        functools.partial(poly_kernel, degree=degree, dimension=dimension),
        out_shape=jax.ShapeDtypeStruct((dimension, M, _LANES), jnp.float32),
        grid_spec=pltpu.PrefetchScalarGridSpec(
            num_scalar_prefetch=0,
            grid=grid,
            in_specs=[
                pl.BlockSpec((bm, _LANES), lambda i: (i, 0)),        # t rows (lane-dense)
                pl.BlockSpec(memory_space=pltpu.MemorySpace.SMEM),   # W as scalars in SMEM
            ],
            out_specs=pl.BlockSpec((dimension, bm, _LANES), lambda i: (0, i, 0)),
        ),
        compiler_params=pltpu.CompilerParams(
            dimension_semantics=("parallel",)),
        cost_estimate=pl.CostEstimate(
            flops=2 * N * degree * dimension,
            transcendentals=0,
            bytes_accessed=4 * N * (1 + dimension) + 4 * degree * dimension),
    )(t2d, w)

    out = out.reshape(dimension, M * _LANES)[:, :N]   # (dimension, N)
    return out.T.reshape(B, L, dimension)


def polynomial_reference(t, w):
    """Pure-JAX reference mirroring the PyTorch code path."""
    degree, dimension = w.shape
    t3 = t[:, None, :]                                                    # (B, 1, L)
    tpow = jnp.concatenate([t3 ** i for i in range(1, degree + 1)], 1)    # (B, degree, L)
    tpow = jnp.transpose(tpow, (0, 2, 1))                                 # (B, L, degree)
    return tpow @ w                                                       # (B, L, dimension)


if __name__ == "__main__":
    degree, dimension = 4, 6
    B, L = 2, 8

    key = jax.random.PRNGKey(0)
    k_t, k_w = jax.random.split(key)

    # Input timesteps (B, L) and deterministic coefficient init
    # (nn.Linear default: U(-1/sqrt(in_features), +1/sqrt(in_features))).
    t = jax.random.uniform(k_t, (B, L), dtype=jnp.float32)
    bound = 1.0 / (degree ** 0.5)
    w_torch = jax.random.uniform(k_w, (dimension, degree), dtype=jnp.float32,
                                 minval=-bound, maxval=bound)  # PyTorch coef.weight
    w = w_torch.T                                              # (degree, dimension) for kernel

    out = jax.block_until_ready(polynomial_forward(t, w))
    ref = polynomial_reference(t, w)
    assert out.shape == (B, L, dimension), out.shape
    assert jnp.allclose(out, ref, atol=1e-5, rtol=1e-5), "mismatch vs reference"

    # Second check exercising tail padding, multiple grid steps and a ragged
    # final block (N=1200 -> M=10 rows, block_rows=8 -> grid=2).
    t2 = jax.random.uniform(jax.random.PRNGKey(1), (4, 300), dtype=jnp.float32)
    out2 = jax.block_until_ready(polynomial_forward(t2, w, block_rows=8))
    ref2 = polynomial_reference(t2, w)
    assert out2.shape == (4, 300, dimension), out2.shape
    assert jnp.allclose(out2, ref2, atol=1e-5, rtol=1e-5), "mismatch vs reference (2)"

    print("KERNEL_OK")
</pallas_src>

<mosaic_0001>
module attributes {stable_mosaic.version = 11 : i64} {
  func.func @poly_kernel(%arg0: i32, %arg1: memref<1x128xf32, #tpu.memory_space<vmem>>, %arg2: memref<4x6xf32, #tpu.memory_space<smem>>, %arg3: memref<6x1x128xf32, #tpu.memory_space<vmem>>) attributes {dimension_semantics = [#tpu.dimension_semantics<parallel>], iteration_bounds = array<i64: 1>, scalar_prefetch = 0 : i64, scratch_operands = 0 : i64, tpu.core_type = #tpu.core_type<tc>, window_params = [{transform_indices = @transform_0, window_bounds = array<i64: 1, 128>}, {transform_indices = @transform_1, window_bounds = array<i64: 4, 6>}, {transform_indices = @transform_2, window_bounds = array<i64: 6, 1, 128>}]} {
    %c0 = arith.constant 0 : index
    %c0_0 = arith.constant 0 : index
    %0 = vector.load %arg1[%c0, %c0_0] : memref<1x128xf32, #tpu.memory_space<vmem>>, vector<1x128xf32>
    %c3 = arith.constant 3 : index
    %c0_1 = arith.constant 0 : index
    %1 = memref.load %arg2[%c3, %c0_1] : memref<4x6xf32, #tpu.memory_space<smem>>
    %2 = vector.broadcast %1 : f32 to vector<1x128xf32>
    %3 = arith.mulf %0, %2 : vector<1x128xf32>
    %c2 = arith.constant 2 : index
    %c0_2 = arith.constant 0 : index
    %4 = memref.load %arg2[%c2, %c0_2] : memref<4x6xf32, #tpu.memory_space<smem>>
    %5 = vector.broadcast %4 : f32 to vector<1x128xf32>
    %6 = arith.addf %3, %5 : vector<1x128xf32>
    %7 = arith.mulf %6, %0 : vector<1x128xf32>
    %c1 = arith.constant 1 : index
    %c0_3 = arith.constant 0 : index
    %8 = memref.load %arg2[%c1, %c0_3] : memref<4x6xf32, #tpu.memory_space<smem>>
    %9 = vector.broadcast %8 : f32 to vector<1x128xf32>
    %10 = arith.addf %7, %9 : vector<1x128xf32>
    %11 = arith.mulf %10, %0 : vector<1x128xf32>
    %c0_4 = arith.constant 0 : index
    %c0_5 = arith.constant 0 : index
    %12 = memref.load %arg2[%c0_4, %c0_5] : memref<4x6xf32, #tpu.memory_space<smem>>
    %13 = vector.broadcast %12 : f32 to vector<1x128xf32>
    %14 = arith.addf %11, %13 : vector<1x128xf32>
    %15 = arith.mulf %14, %0 : vector<1x128xf32>
    %c0_6 = arith.constant 0 : index
    %c0_7 = arith.constant 0 : index
    %c0_8 = arith.constant 0 : index
    %16 = vector.load %arg3[%c0_6, %c0_7, %c0_8] : memref<6x1x128xf32, #tpu.memory_space<vmem>>, vector<1x1x128xf32>
    %17 = vector.shape_cast %16 : vector<1x1x128xf32> to vector<1x128xf32>
    %18 = vector.shape_cast %15 : vector<1x128xf32> to vector<1x1x128xf32>
    tpu.vector_store %arg3[%c0_6, %c0_7, %c0_8], %18 {strides = array<i32>} : memref<6x1x128xf32, #tpu.memory_space<vmem>>, vector<1x1x128xf32>,
    %c3_9 = arith.constant 3 : index
    %c1_10 = arith.constant 1 : index
    %19 = memref.load %arg2[%c3_9, %c1_10] : memref<4x6xf32, #tpu.memory_space<smem>>
    %20 = vector.broadcast %19 : f32 to vector<1x128xf32>
    %21 = arith.mulf %0, %20 : vector<1x128xf32>
    %c2_11 = arith.constant 2 : index
    %c1_12 = arith.constant 1 : index
    %22 = memref.load %arg2[%c2_11, %c1_12] : memref<4x6xf32, #tpu.memory_space<smem>>
    %23 = vector.broadcast %22 : f32 to vector<1x128xf32>
    %24 = arith.addf %21, %23 : vector<1x128xf32>
    %25 = arith.mulf %24, %0 : vector<1x128xf32>
    %c1_13 = arith.constant 1 : index
    %c1_14 = arith.constant 1 : index
    %26 = memref.load %arg2[%c1_13, %c1_14] : memref<4x6xf32, #tpu.memory_space<smem>>
    %27 = vector.broadcast %26 : f32 to vector<1x128xf32>
    %28 = arith.addf %25, %27 : vector<1x128xf32>
    %29 = arith.mulf %28, %0 : vector<1x128xf32>
    %c0_15 = arith.constant 0 : index
    %c1_16 = arith.constant 1 : index
    %30 = memref.load %arg2[%c0_15, %c1_16] : memref<4x6xf32, #tpu.memory_space<smem>>
    %31 = vector.broadcast %30 : f32 to vector<1x128xf32>
    %32 = arith.addf %29, %31 : vector<1x128xf32>
    %33 = arith.mulf %32, %0 : vector<1x128xf32>
    %c1_17 = arith.constant 1 : index
    %c0_18 = arith.constant 0 : index
    %c0_19 = arith.constant 0 : index
    %34 = vector.load %arg3[%c1_17, %c0_18, %c0_19] : memref<6x1x128xf32, #tpu.memory_space<vmem>>, vector<1x1x128xf32>
    %35 = vector.shape_cast %34 : vector<1x1x128xf32> to vector<1x128xf32>
    %36 = vector.shape_cast %33 : vector<1x128xf32> to vector<1x1x128xf32>
    tpu.vector_store %arg3[%c1_17, %c0_18, %c0_19], %36 {strides = array<i32>} : memref<6x1x128xf32, #tpu.memory_space<vmem>>, vector<1x1x128xf32>,
    %c3_20 = arith.constant 3 : index
    %c2_21 = arith.constant 2 : index
    %37 = memref.load %arg2[%c3_20, %c2_21] : memref<4x6xf32, #tpu.memory_space<smem>>
    %38 = vector.broadcast %37 : f32 to vector<1x128xf32>
    %39 = arith.mulf %0, %38 : vector<1x128xf32>
    %c2_22 = arith.constant 2 : index
    %c2_23 = arith.constant 2 : index
    %40 = memref.load %arg2[%c2_22, %c2_23] : memref<4x6xf32, #tpu.memory_space<smem>>
    %41 = vector.broadcast %40 : f32 to vector<1x128xf32>
    %42 = arith.addf %39, %41 : vector<1x128xf32>
    %43 = arith.mulf %42, %0 : vector<1x128xf32>
    %c1_24 = arith.constant 1 : index
    %c2_25 = arith.constant 2 : index
    %44 = memref.load %arg2[%c1_24, %c2_25] : memref<4x6xf32, #tpu.memory_space<smem>>
    %45 = vector.broadcast %44 : f32 to vector<1x128xf32>
    %46 = arith.addf %43, %45 : vector<1x128xf32>
    %47 = arith.mulf %46, %0 : vector<1x128xf32>
    %c0_26 = arith.constant 0 : index
    %c2_27 = arith.constant 2 : index
    %48 = memref.load %arg2[%c0_26, %c2_27] : memref<4x6xf32, #tpu.memory_space<smem>>
    %49 = vector.broadcast %48 : f32 to vector<1x128xf32>
    %50 = arith.addf %47, %49 : vector<1x128xf32>
    %51 = arith.mulf %50, %0 : vector<1x128xf32>
    %c2_28 = arith.constant 2 : index
    %c0_29 = arith.constant 0 : index
    %c0_30 = arith.constant 0 : index
    %52 = vector.load %arg3[%c2_28, %c0_29, %c0_30] : memref<6x1x128xf32, #tpu.memory_space<vmem>>, vector<1x1x128xf32>
    %53 = vector.shape_cast %52 : vector<1x1x128xf32> to vector<1x128xf32>
    %54 = vector.shape_cast %51 : vector<1x128xf32> to vector<1x1x128xf32>
    tpu.vector_store %arg3[%c2_28, %c0_29, %c0_30], %54 {strides = array<i32>} : memref<6x1x128xf32, #tpu.memory_space<vmem>>, vector<1x1x128xf32>,
    %c3_31 = arith.constant 3 : index
    %c3_32 = arith.constant 3 : index
    %55 = memref.load %arg2[%c3_31, %c3_32] : memref<4x6xf32, #tpu.memory_space<smem>>
    %56 = vector.broadcast %55 : f32 to vector<1x128xf32>
    %57 = arith.mulf %0, %56 : vector<1x128xf32>
    %c2_33 = arith.constant 2 : index
    %c3_34 = arith.constant 3 : index
    %58 = memref.load %arg2[%c2_33, %c3_34] : memref<4x6xf32, #tpu.memory_space<smem>>
    %59 = vector.broadcast %58 : f32 to vector<1x128xf32>
    %60 = arith.addf %57, %59 : vector<1x128xf32>
    %61 = arith.mulf %60, %0 : vector<1x128xf32>
    %c1_35 = arith.constant 1 : index
    %c3_36 = arith.constant 3 : index
    %62 = memref.load %arg2[%c1_35, %c3_36] : memref<4x6xf32, #tpu.memory_space<smem>>
    %63 = vector.broadcast %62 : f32 to vector<1x128xf32>
    %64 = arith.addf %61, %63 : vector<1x128xf32>
    %65 = arith.mulf %64, %0 : vector<1x128xf32>
    %c0_37 = arith.constant 0 : index
    %c3_38 = arith.constant 3 : index
    %66 = memref.load %arg2[%c0_37, %c3_38] : memref<4x6xf32, #tpu.memory_space<smem>>
    %67 = vector.broadcast %66 : f32 to vector<1x128xf32>
    %68 = arith.addf %65, %67 : vector<1x128xf32>
    %69 = arith.mulf %68, %0 : vector<1x128xf32>
    %c3_39 = arith.constant 3 : index
    %c0_40 = arith.constant 0 : index
    %c0_41 = arith.constant 0 : index
    %70 = vector.load %arg3[%c3_39, %c0_40, %c0_41] : memref<6x1x128xf32, #tpu.memory_space<vmem>>, vector<1x1x128xf32>
    %71 = vector.shape_cast %70 : vector<1x1x128xf32> to vector<1x128xf32>
    %72 = vector.shape_cast %69 : vector<1x128xf32> to vector<1x1x128xf32>
    tpu.vector_store %arg3[%c3_39, %c0_40, %c0_41], %72 {strides = array<i32>} : memref<6x1x128xf32, #tpu.memory_space<vmem>>, vector<1x1x128xf32>,
    %c3_42 = arith.constant 3 : index
    %c4 = arith.constant 4 : index
    %73 = memref.load %arg2[%c3_42, %c4] : memref<4x6xf32, #tpu.memory_space<smem>>
    %74 = vector.broadcast %73 : f32 to vector<1x128xf32>
    %75 = arith.mulf %0, %74 : vector<1x128xf32>
    %c2_43 = arith.constant 2 : index
    %c4_44 = arith.constant 4 : index
    %76 = memref.load %arg2[%c2_43, %c4_44] : memref<4x6xf32, #tpu.memory_space<smem>>
    %77 = vector.broadcast %76 : f32 to vector<1x128xf32>
    %78 = arith.addf %75, %77 : vector<1x128xf32>
    %79 = arith.mulf %78, %0 : vector<1x128xf32>
    %c1_45 = arith.constant 1 : index
    %c4_46 = arith.constant 4 : index
    %80 = memref.load %arg2[%c1_45, %c4_46] : memref<4x6xf32, #tpu.memory_space<smem>>
    %81 = vector.broadcast %80 : f32 to vector<1x128xf32>
    %82 = arith.addf %79, %81 : vector<1x128xf32>
    %83 = arith.mulf %82, %0 : vector<1x128xf32>
    %c0_47 = arith.constant 0 : index
    %c4_48 = arith.constant 4 : index
    %84 = memref.load %arg2[%c0_47, %c4_48] : memref<4x6xf32, #tpu.memory_space<smem>>
    %85 = vector.broadcast %84 : f32 to vector<1x128xf32>
    %86 = arith.addf %83, %85 : vector<1x128xf32>
    %87 = arith.mulf %86, %0 : vector<1x128xf32>
    %c4_49 = arith.constant 4 : index
    %c0_50 = arith.constant 0 : index
    %c0_51 = arith.constant 0 : index
    %88 = vector.load %arg3[%c4_49, %c0_50, %c0_51] : memref<6x1x128xf32, #tpu.memory_space<vmem>>, vector<1x1x128xf32>
    %89 = vector.shape_cast %88 : vector<1x1x128xf32> to vector<1x128xf32>
    %90 = vector.shape_cast %87 : vector<1x128xf32> to vector<1x1x128xf32>
    tpu.vector_store %arg3[%c4_49, %c0_50, %c0_51], %90 {strides = array<i32>} : memref<6x1x128xf32, #tpu.memory_space<vmem>>, vector<1x1x128xf32>,
    %c3_52 = arith.constant 3 : index
    %c5 = arith.constant 5 : index
    %91 = memref.load %arg2[%c3_52, %c5] : memref<4x6xf32, #tpu.memory_space<smem>>
    %92 = vector.broadcast %91 : f32 to vector<1x128xf32>
    %93 = arith.mulf %0, %92 : vector<1x128xf32>
    %c2_53 = arith.constant 2 : index
    %c5_54 = arith.constant 5 : index
    %94 = memref.load %arg2[%c2_53, %c5_54] : memref<4x6xf32, #tpu.memory_space<smem>>
    %95 = vector.broadcast %94 : f32 to vector<1x128xf32>
    %96 = arith.addf %93, %95 : vector<1x128xf32>
    %97 = arith.mulf %96, %0 : vector<1x128xf32>
    %c1_55 = arith.constant 1 : index
    %c5_56 = arith.constant 5 : index
    %98 = memref.load %arg2[%c1_55, %c5_56] : memref<4x6xf32, #tpu.memory_space<smem>>
    %99 = vector.broadcast %98 : f32 to vector<1x128xf32>
    %100 = arith.addf %97, %99 : vector<1x128xf32>
    %101 = arith.mulf %100, %0 : vector<1x128xf32>
    %c0_57 = arith.constant 0 : index
    %c5_58 = arith.constant 5 : index
    %102 = memref.load %arg2[%c0_57, %c5_58] : memref<4x6xf32, #tpu.memory_space<smem>>
    %103 = vector.broadcast %102 : f32 to vector<1x128xf32>
    %104 = arith.addf %101, %103 : vector<1x128xf32>
    %105 = arith.mulf %104, %0 : vector<1x128xf32>
    %c5_59 = arith.constant 5 : index
    %c0_60 = arith.constant 0 : index
    %c0_61 = arith.constant 0 : index
    %106 = vector.load %arg3[%c5_59, %c0_60, %c0_61] : memref<6x1x128xf32, #tpu.memory_space<vmem>>, vector<1x1x128xf32>
    %107 = vector.shape_cast %106 : vector<1x1x128xf32> to vector<1x128xf32>
    %108 = vector.shape_cast %105 : vector<1x128xf32> to vector<1x1x128xf32>
    tpu.vector_store %arg3[%c5_59, %c0_60, %c0_61], %108 {strides = array<i32>} : memref<6x1x128xf32, #tpu.memory_space<vmem>>, vector<1x1x128xf32>,
    return
  }
  func.func @transform_0(%arg0: i32) -> (i32, i32) {
    %c0_i32 = arith.constant 0 : i32
    %c0_i32_0 = arith.constant 0 : i32
    return %arg0, %c0_i32 : i32, i32
  }
  func.func @transform_1(%arg0: i32) -> (i32, i32) {
    %c0_i32 = arith.constant 0 : i32
    %c0_i32_0 = arith.constant 0 : i32
    %c0_i32_1 = arith.constant 0 : i32
    return %c0_i32, %c0_i32_0 : i32, i32
  }
  func.func @transform_2(%arg0: i32) -> (i32, i32, i32) {
    %c0_i32 = arith.constant 0 : i32
    %c0_i32_0 = arith.constant 0 : i32
    %c0_i32_1 = arith.constant 0 : i32
    return %c0_i32, %arg0, %c0_i32_0 : i32, i32, i32
  }
}

</mosaic_0001>

<llo_original>
// kernel: tpu_custom_call.1
$region0: #{tpu_custom_call.1}
  #allocation0 [shape = 'u32[]', space=smem, size = 0x4, offset = 0x4, fixed_abs, tag = 'smem constant byte address 0x4 - core index']
  #allocation1 [shape = 'u32[144,128]{1,0:T(1,128)}', space=vmem, size = 0x12000, scoped, tag = 'internal scratch']
  %s0 = inlined_call_operand.hbm [shape: f32[1,128], index: 0, kind: input, shape index: {}]
  %s1 = inlined_call_operand.hbm [shape: f32[4,6], index: 1, kind: input, shape index: {}]
  %s2 = inlined_call_operand.hbm [shape: f32[6,1,128], index: 2, kind: output, shape index: {}]
  %s3 = sld [smem:[#allocation0]]
  $region26: #{tpu_custom_call.1} parent=0
    _
  %s5 = ssub.s32 1, %s3
  %s6 = scalar_select 0, %s5, %s3
  $region1: #{tpu_custom_call.1} parent=0
    #allocation2 [shape = 'u8[512]{0}', space=vmem, size = 0x400, scoped, tag = 'input window, operand 0, single buffered']
    #allocation3 [shape = 's32[1]{0}', space=sflag, size = 0x4, scoped, tag = 'scoped memory for tpu_custom_call.1']
    #allocation4 [shape = 's32[1]{0}', space=sflag, size = 0x4, scoped, tag = 'scoped memory for tpu_custom_call.1']
    #allocation5 [shape = 's32[1]{0}', space=sflag, size = 0x4, scoped, tag = 'scoped memory for tpu_custom_call.1']
    #allocation6 [shape = 'u8[2048]{0}', space=smem, size = 0x800, scoped, tag = 'input window, operand 1, single buffered']
    #allocation7 [shape = 'u8[3072]{0}', space=vmem, size = 0xc00, scoped, tag = 'output window, operand 0, single buffered']
    %7 = vsyncpa [#allocation3], 0
    %8 = vsyncpa [#allocation5], 0
    %9 = vsyncpa [#allocation4], 0
    // Predicated region
    $region2: #{tpu_custom_call.1} parent=1 // pred_check
      _
    $region3: #{tpu_custom_call.1} parent=1 // pred_check_branch
      %11 = sbr.rel (0) target = $region5
    $region4: #{tpu_custom_call.1} parent=1 // pred_region
      %s13 = ssub.s32 16, 16
      %14 = vsyncadd [#allocation3], %s13
      %s16 = sshll.u32 [#allocation2], 4
      %s17 = int_to_ptr.vmem [resolvable:$true] %s16
      %19 = dma.hbm_to_vmem [thread:$0]  %s0, 16, %s17, [#allocation3]
    $region5: #{tpu_custom_call.1} parent=1 // pred_fallthru
      _
    // Predicated region
    $region6: #{tpu_custom_call.1} parent=1 // pred_check
      _
    $region7: #{tpu_custom_call.1} parent=1 // pred_check_branch
      %21 = sbr.rel (0) target = $region9
    $region8: #{tpu_custom_call.1} parent=1 // pred_region
      %s23 = ssub.s32 64, 64
      %24 = vsyncadd [#allocation5], %s23
      %27 = dma.hbm_to_smem %s1, 64, [#allocation6], [#allocation5]
    $region9: #{tpu_custom_call.1} parent=1 // pred_fallthru
      _
    // Predicated region
    $region10: #{tpu_custom_call.1} parent=1 // pred_check
      _
    $region11: #{tpu_custom_call.1} parent=1 // pred_check_branch
      %29 = sbr.rel (0) target = $region13
    $region12: #{tpu_custom_call.1} parent=1 // pred_region
      %30 = dma.done [#allocation3], 16
    $region13: #{tpu_custom_call.1} parent=1 // pred_fallthru
      _
    // Predicated region
    $region14: #{tpu_custom_call.1} parent=1 // pred_check
      _
    $region15: #{tpu_custom_call.1} parent=1 // pred_check_branch
      %32 = sbr.rel (0) target = $region17
    $region16: #{tpu_custom_call.1} parent=1 // pred_region
      %33 = dma.done [#allocation5], 64
    $region17: #{tpu_custom_call.1} parent=1 // pred_fallthru
      _
    %34 = sfence
    %v35 = vld [vmem:[#allocation2] sm:$0x1]
    %s36 = sld [smem:[#allocation6 + $0x180]]
    %v37 = vstv %s36
    %v38 = vmul.f32 %v35, %v37
    %s39 = sld [smem:[#allocation6 + $0x100]]
    %v40 = vstv %s39
    %v41 = vadd.f32 %v38, %v40
    %v42 = vmul.f32 %v41, %v35
    %s43 = sld [smem:[#allocation6 + $0x80]]
    %v44 = vstv %s43
    %v45 = vadd.f32 %v42, %v44
    %v46 = vmul.f32 %v45, %v35
    %s47 = sld [smem:[#allocation6]]
    %v48 = vstv %s47
    %v49 = vadd.f32 %v46, %v48
    %v50 = vmul.f32 %v49, %v35
    %51 = vst [vmem:[#allocation7] sm:$0x1] %v50
    %s52 = sld [smem:[#allocation6 + $0x181]]
    %v53 = vstv %s52
    %v54 = vmul.f32 %v35, %v53
    %s55 = sld [smem:[#allocation6 + $0x101]]
    %v56 = vstv %s55
    %v57 = vadd.f32 %v54, %v56
    %v58 = vmul.f32 %v57, %v35
    %s59 = sld [smem:[#allocation6 + $0x81]]
    %v60 = vstv %s59
    %v61 = vadd.f32 %v58, %v60
    %v62 = vmul.f32 %v61, %v35
    %s63 = sld [smem:[#allocation6 + $0x1]]
    %v64 = vstv %s63
    %v65 = vadd.f32 %v62, %v64
    %v66 = vmul.f32 %v65, %v35
    %s67 = scalar_lea.vmem [#allocation7], 1
    %68 = vst [vmem:[%s67] sm:$0x1] %v66
    %s69 = sld [smem:[#allocation6 + $0x182]]
    %v70 = vstv %s69
    %v71 = vmul.f32 %v35, %v70
    %s72 = sld [smem:[#allocation6 + $0x102]]
    %v73 = vstv %s72
    %v74 = vadd.f32 %v71, %v73
    %v75 = vmul.f32 %v74, %v35
    %s76 = sld [smem:[#allocation6 + $0x82]]
    %v77 = vstv %s76
    %v78 = vadd.f32 %v75, %v77
    %v79 = vmul.f32 %v78, %v35
    %s80 = sld [smem:[#allocation6 + $0x2]]
    %v81 = vstv %s80
    %v82 = vadd.f32 %v79, %v81
    %v83 = vmul.f32 %v82, %v35
    %s84 = scalar_lea.vmem [#allocation7], 2
    %85 = vst [vmem:[%s84] sm:$0x1] %v83
    %s86 = sld [smem:[#allocation6 + $0x183]]
    %v87 = vstv %s86
    %v88 = vmul.f32 %v35, %v87
    %s89 = sld [smem:[#allocation6 + $0x103]]
    %v90 = vstv %s89
    %v91 = vadd.f32 %v88, %v90
    %v92 = vmul.f32 %v91, %v35
    %s93 = sld [smem:[#allocation6 + $0x83]]
    %v94 = vstv %s93
    %v95 = vadd.f32 %v92, %v94
    %v96 = vmul.f32 %v95, %v35
    %s97 = sld [smem:[#allocation6 + $0x3]]
    %v98 = vstv %s97
    %v99 = vadd.f32 %v96, %v98
    %v100 = vmul.f32 %v99, %v35
    %s101 = scalar_lea.vmem [#allocation7], 3
    %102 = vst [vmem:[%s101] sm:$0x1] %v100
    %s103 = sld [smem:[#allocation6 + $0x184]]
    %v104 = vstv %s103
    %v105 = vmul.f32 %v35, %v104
    %s106 = sld [smem:[#allocation6 + $0x104]]
    %v107 = vstv %s106
    %v108 = vadd.f32 %v105, %v107
    %v109 = vmul.f32 %v108, %v35
    %s110 = sld [smem:[#allocation6 + $0x84]]
    %v111 = vstv %s110
    %v112 = vadd.f32 %v109, %v111
    %v113 = vmul.f32 %v112, %v35
    %s114 = sld [smem:[#allocation6 + $0x4]]
    %v115 = vstv %s114
    %v116 = vadd.f32 %v113, %v115
    %v117 = vmul.f32 %v116, %v35
    %s118 = scalar_lea.vmem [#allocation7], 4
    %119 = vst [vmem:[%s118] sm:$0x1] %v117
    %s120 = sld [smem:[#allocation6 + $0x185]]
    %v121 = vstv %s120
    %v122 = vmul.f32 %v35, %v121
    %s123 = sld [smem:[#allocation6 + $0x105]]
    %v124 = vstv %s123
    %v125 = vadd.f32 %v122, %v124
    %v126 = vmul.f32 %v125, %v35
    %s127 = sld [smem:[#allocation6 + $0x85]]
    %v128 = vstv %s127
    %v129 = vadd.f32 %v126, %v128
    %v130 = vmul.f32 %v129, %v35
    %s131 = sld [smem:[#allocation6 + $0x5]]
    %v132 = vstv %s131
    %v133 = vadd.f32 %v130, %v132
    %v134 = vmul.f32 %v133, %v35
    %s135 = scalar_lea.vmem [#allocation7], 5
    %136 = vst [vmem:[%s135] sm:$0x1] %v134
    // Predicated region
    $region18: #{tpu_custom_call.1} parent=1 // pred_check
      _
    $region19: #{tpu_custom_call.1} parent=1 // pred_check_branch
      %138 = sbr.rel (0) target = $region21
    $region20: #{tpu_custom_call.1} parent=1 // pred_region
      %s140 = ssub.s32 96, 96
      %141 = vsyncadd [#allocation4], %s140
      %s142 = sshll.u32 [#allocation7], 4
      %s143 = int_to_ptr.vmem [resolvable:$true] %s142
      %148 = dma.vmem_to_hbm [thread:$0]  %s143, 96, %s2, [#allocation4], 16, 16, 1
    $region21: #{tpu_custom_call.1} parent=1 // pred_fallthru
      _
    // Predicated region
    $region22: #{tpu_custom_call.1} parent=1 // pred_check
      _
    $region23: #{tpu_custom_call.1} parent=1 // pred_check_branch
      %150 = sbr.rel (0) target = $region25
    $region24: #{tpu_custom_call.1} parent=1 // pred_region
      %151 = dma.done [#allocation4], 96
    $region25: #{tpu_custom_call.1} parent=1 // pred_fallthru
      _
    %152 = vsyncpa [#allocation3], 1
    %153 = vsyncpa [#allocation4], 1
    %154 = vsyncpa [#allocation5], 1

</llo_original>
